<compile_context>
chip_gen: v7x
topology: tpu7x:2x2x1
jax: 0.10.0
libtpu: 0.0.40
codegen_flags: <defaults>
</compile_context>

<pallas_src>
import jax
import jax.numpy as jnp
from jax.experimental import pallas as pl
from jax.experimental.pallas import tpu as pltpu


def _round_up(v, m):
    return ((v + m - 1) // m) * m


def reglu_kernel(x_ref, w_ref, b_ref, o_ref, acc_ref):
    # Grid: (M tiles, N tiles, K tiles); K is the (last, "arbitrary") reduction
    # axis, accumulated into a resident f32 VMEM scratch of shape (tm, 2*tn).
    k = pl.program_id(2)

    @pl.when(k == 0)
    def _():
        acc_ref[...] = jnp.zeros_like(acc_ref)

    # One wide matmul covering both the gate and the linear projection:
    # w_ref is the packed [gate_block | linear_block] tile of shape (tk, 2*tn).
    acc_ref[...] += jnp.dot(x_ref[...], w_ref[...],
                            preferred_element_type=jnp.float32)

    @pl.when(k == pl.num_programs(2) - 1)
    def _():
        tn = o_ref.shape[-1]
        r = acc_ref[...] + b_ref[...].astype(jnp.float32)   # (tm, 2*tn)
        gate = jnp.maximum(r[:, :tn], 0.0)
        lin = r[:, tn:]
        o_ref[...] = (gate * lin).astype(o_ref.dtype)


def reglu(x, gate_weight, linear_weight, gate_bias, linear_bias, *,
          tm=256, tn=256, tk=512, compute_dtype=None):
    """x: (..., out_feature); weights: (in_feature, out_feature); biases: (out_feature,).

    All the transpose / pad / pack work below is glue (constant-folds for
    static weights under jit); the hot path is entirely inside the kernel.
    """
    in_feature, out_feature = gate_weight.shape
    assert x.shape[-1] == out_feature, "F.linear contracts against weight.shape[1]"
    # Same constraint as the PyTorch module: bias (out_feature,) must broadcast
    # against an output of width in_feature.
    assert in_feature == out_feature

    lead_shape = x.shape[:-1]
    K = out_feature          # contraction dim
    N = in_feature           # output dim
    x2d = x.reshape(-1, K)
    M = x2d.shape[0]

    # MXU/lane-aligned tiles, never larger than the (padded) problem.
    tm_e = min(tm, _round_up(M, 8))
    tn_e = min(tn, _round_up(N, 128))
    tk_e = min(tk, _round_up(K, 128))

    Mp = _round_up(M, tm_e)
    Np = _round_up(N, tn_e)
    Kp = _round_up(K, tk_e)

    op_dtype = compute_dtype if compute_dtype is not None else x.dtype

    # Zero-pad (zeros are inert through the matmul / ReLU / product and the
    # padded rows/cols are sliced away afterwards).
    x_p = jnp.pad(x2d, ((0, Mp - M), (0, Kp - K))).astype(op_dtype)
    gw_t = jnp.pad(jnp.transpose(gate_weight), ((0, Kp - K), (0, Np - N)))
    lw_t = jnp.pad(jnp.transpose(linear_weight), ((0, Kp - K), (0, Np - N)))
    gb = jnp.pad(gate_bias, (0, Np - N)).astype(jnp.float32)
    lb = jnp.pad(linear_bias, (0, Np - N)).astype(jnp.float32)

    # Pack [gate | linear] per tn-block along N so each grid (i, j, k) step
    # loads one (tk, 2*tn) weight tile and runs a single MXU matmul.
    nb = Np // tn_e
    w_pk = jnp.concatenate(
        [gw_t.reshape(Kp, nb, 1, tn_e), lw_t.reshape(Kp, nb, 1, tn_e)],
        axis=2).reshape(Kp, 2 * Np).astype(op_dtype)
    b_pk = jnp.concatenate(
        [gb.reshape(1, nb, 1, tn_e), lb.reshape(1, nb, 1, tn_e)],
        axis=2).reshape(1, 2 * Np)

    grid = (Mp // tm_e, nb, Kp // tk_e)

    out2d = pl.pallas_call(
        reglu_kernel,
        out_shape=jax.ShapeDtypeStruct((Mp, Np), x.dtype),
        grid_spec=pltpu.PrefetchScalarGridSpec(
            num_scalar_prefetch=0,
            grid=grid,
            in_specs=[
                pl.BlockSpec((tm_e, tk_e), lambda i, j, k: (i, k)),      # x tile
                pl.BlockSpec((tk_e, 2 * tn_e), lambda i, j, k: (k, j)),  # packed weights
                pl.BlockSpec((1, 2 * tn_e), lambda i, j, k: (0, j)),     # packed biases
            ],
            out_specs=pl.BlockSpec((tm_e, tn_e), lambda i, j, k: (i, j)),
            scratch_shapes=[pltpu.VMEM((tm_e, 2 * tn_e), jnp.float32)],
        ),
        compiler_params=pltpu.CompilerParams(
            dimension_semantics=("parallel", "parallel", "arbitrary"),
            vmem_limit_bytes=48 * 1024 * 1024),
    )(x_p, w_pk, b_pk)

    return out2d[:M, :N].reshape(*lead_shape, N)


def reglu_ref(x, gate_weight, linear_weight, gate_bias, linear_bias):
    gate = jax.nn.relu(jnp.einsum("...k,nk->...n", x, gate_weight) + gate_bias)
    lin = jnp.einsum("...k,nk->...n", x, linear_weight) + linear_bias
    return gate * lin


if __name__ == "__main__":
    batch, seq = 2, 8
    in_feature = out_feature = 32   # must match for the module's bias broadcast

    key = jax.random.PRNGKey(0)
    kx, kg, kl, kgb, klb = jax.random.split(key, 5)

    x = jax.random.normal(kx, (batch, seq, out_feature), dtype=jnp.float32)
    # Deterministic synthetic parameters (shapes from ReGLU.__init__).
    gate_weight = jax.random.normal(kg, (in_feature, out_feature), jnp.float32) * 0.1
    linear_weight = jax.random.normal(kl, (in_feature, out_feature), jnp.float32) * 0.1
    gate_bias = jax.random.normal(kgb, (out_feature,), jnp.float32) * 0.1
    linear_bias = jax.random.normal(klb, (out_feature,), jnp.float32) * 0.1

    out = reglu(x, gate_weight, linear_weight, gate_bias, linear_bias)
    out = jax.block_until_ready(out)

    expected = reglu_ref(x, gate_weight, linear_weight, gate_bias, linear_bias)
    assert out.shape == expected.shape
    assert jnp.allclose(out, expected, atol=1e-4, rtol=1e-4)

    print("KERNEL_OK")
</pallas_src>

<mosaic_0001>
module attributes {stable_mosaic.version = 11 : i64} {
  func.func @reglu_kernel(%arg0: i32, %arg1: i32, %arg2: i32, %arg3: memref<16x128xf32, #tpu.memory_space<vmem>>, %arg4: memref<128x256xf32, #tpu.memory_space<vmem>>, %arg5: memref<1x256xf32, #tpu.memory_space<vmem>>, %arg6: memref<16x128xf32, #tpu.memory_space<vmem>>, %arg7: memref<16x256xf32, #tpu.memory_space<vmem>>) attributes {dimension_semantics = [#tpu.dimension_semantics<parallel>, #tpu.dimension_semantics<parallel>, #tpu.dimension_semantics<arbitrary>], iteration_bounds = array<i64: 1, 1, 1>, scalar_prefetch = 0 : i64, scratch_operands = 1 : i64, tpu.core_type = #tpu.core_type<tc>, window_params = [{transform_indices = @transform_0, window_bounds = array<i64: 16, 128>}, {transform_indices = @transform_1, window_bounds = array<i64: 128, 256>}, {transform_indices = @transform_2, window_bounds = array<i64: 1, 256>}, {transform_indices = @transform_3, window_bounds = array<i64: 16, 128>}]} {
    %c0_i32 = arith.constant 0 : i32
    %0 = arith.cmpi eq, %arg2, %c0_i32 : i32
    %1 = arith.extui %0 : i1 to i32
    %c0_i32_0 = arith.constant 0 : i32
    %2 = arith.cmpi ne, %1, %c0_i32_0 : i32
    scf.if %2 {
      %cst_10 = arith.constant 0.000000e+00 : f32
      %12 = vector.broadcast %cst_10 : f32 to vector<16x256xf32>
      %c0_11 = arith.constant 0 : index
      %c0_12 = arith.constant 0 : index
      %13 = vector.load %arg7[%c0_11, %c0_12] : memref<16x256xf32, #tpu.memory_space<vmem>>, vector<16x256xf32>
      tpu.vector_store %arg7[%c0_11, %c0_12], %12 {strides = array<i32>} : memref<16x256xf32, #tpu.memory_space<vmem>>, vector<16x256xf32>,
    } else {
    }
    %c0 = arith.constant 0 : index
    %c0_1 = arith.constant 0 : index
    %3 = vector.load %arg7[%c0, %c0_1] : memref<16x256xf32, #tpu.memory_space<vmem>>, vector<16x256xf32>
    %c0_2 = arith.constant 0 : index
    %c0_3 = arith.constant 0 : index
    %4 = vector.load %arg3[%c0_2, %c0_3] : memref<16x128xf32, #tpu.memory_space<vmem>>, vector<16x128xf32>
    %c0_4 = arith.constant 0 : index
    %c0_5 = arith.constant 0 : index
    %5 = vector.load %arg4[%c0_4, %c0_5] : memref<128x256xf32, #tpu.memory_space<vmem>>, vector<128x256xf32>
    %cst = arith.constant dense<0.000000e+00> : vector<16x256xf32>
    %6 = tpu.matmul %4, %5, %cst {dimension_numbers = #tpu.dot_dimension_numbers<[1], [0], [0], [1], [0, 0, 1, 1], [], []>} : vector<16x128xf32>, vector<128x256xf32>, vector<16x256xf32> -> vector<16x256xf32>
    %7 = arith.addf %3, %6 : vector<16x256xf32>
    %c0_6 = arith.constant 0 : index
    %c0_7 = arith.constant 0 : index
    %8 = vector.load %arg7[%c0_6, %c0_7] : memref<16x256xf32, #tpu.memory_space<vmem>>, vector<16x256xf32>
    tpu.vector_store %arg7[%c0_6, %c0_7], %7 {strides = array<i32>} : memref<16x256xf32, #tpu.memory_space<vmem>>, vector<16x256xf32>,
    %c0_i32_8 = arith.constant 0 : i32
    %9 = arith.cmpi eq, %arg2, %c0_i32_8 : i32
    %10 = arith.extui %9 : i1 to i32
    %c0_i32_9 = arith.constant 0 : i32
    %11 = arith.cmpi ne, %10, %c0_i32_9 : i32
    scf.if %11 {
      %c0_10 = arith.constant 0 : index
      %c0_11 = arith.constant 0 : index
      %12 = vector.load %arg7[%c0_10, %c0_11] : memref<16x256xf32, #tpu.memory_space<vmem>>, vector<16x256xf32>
      %c0_12 = arith.constant 0 : index
      %c0_13 = arith.constant 0 : index
      %13 = vector.load %arg5[%c0_12, %c0_13] : memref<1x256xf32, #tpu.memory_space<vmem>>, vector<1x256xf32>
      %14 = vector.broadcast %13 : vector<1x256xf32> to vector<16x256xf32>
      %15 = arith.addf %12, %14 : vector<16x256xf32>
      %16 = vector.extract_strided_slice %15 {offsets = [0, 0], sizes = [16, 128], strides = [1, 1]} : vector<16x256xf32> to vector<16x128xf32>
      %cst_14 = arith.constant 0.000000e+00 : f32
      %17 = vector.broadcast %cst_14 : f32 to vector<16x128xf32>
      %18 = arith.maximumf %16, %17 : vector<16x128xf32>
      %19 = vector.extract_strided_slice %15 {offsets = [0, 128], sizes = [16, 128], strides = [1, 1]} : vector<16x256xf32> to vector<16x128xf32>
      %20 = arith.mulf %18, %19 : vector<16x128xf32>
      %c0_15 = arith.constant 0 : index
      %c0_16 = arith.constant 0 : index
      %21 = vector.load %arg6[%c0_15, %c0_16] : memref<16x128xf32, #tpu.memory_space<vmem>>, vector<16x128xf32>
      tpu.vector_store %arg6[%c0_15, %c0_16], %20 {strides = array<i32>} : memref<16x128xf32, #tpu.memory_space<vmem>>, vector<16x128xf32>,
    } else {
    }
    return
  }
  func.func @transform_0(%arg0: i32, %arg1: i32, %arg2: i32) -> (i32, i32) {
    %c0_i32 = arith.constant 0 : i32
    return %arg0, %arg2 : i32, i32
  }
  func.func @transform_1(%arg0: i32, %arg1: i32, %arg2: i32) -> (i32, i32) {
    %c0_i32 = arith.constant 0 : i32
    return %arg2, %arg1 : i32, i32
  }
  func.func @transform_2(%arg0: i32, %arg1: i32, %arg2: i32) -> (i32, i32) {
    %c0_i32 = arith.constant 0 : i32
    %c0_i32_0 = arith.constant 0 : i32
    return %c0_i32, %arg1 : i32, i32
  }
  func.func @transform_3(%arg0: i32, %arg1: i32, %arg2: i32) -> (i32, i32) {
    %c0_i32 = arith.constant 0 : i32
    return %arg0, %arg1 : i32, i32
  }
}

</mosaic_0001>

<llo_original>
// kernel: tpu_custom_call.1
$region0: #{tpu_custom_call.1}
  #allocation0 [shape = 'u32[]', space=smem, size = 0x4, offset = 0x4, fixed_abs, tag = 'smem constant byte address 0x4 - core index']
  #allocation1 [shape = 'u32[144,128]{1,0:T(1,128)}', space=vmem, size = 0x12000, scoped, tag = 'internal scratch']
  #allocation2 [shape = 'f32[16,256]{1,0:T(8,128)}', space=vmem, size = 0x4000, scoped, tag = 'scratch operand']
  %s0 = inlined_call_operand.hbm [shape: f32[16,128], index: 0, kind: input, shape index: {}]
  %s1 = inlined_call_operand.hbm [shape: f32[128,256], index: 1, kind: input, shape index: {}]
  %s2 = inlined_call_operand.vmem [shape: f32[1,256], index: 2, kind: input, shape index: {}]
  %s3 = inlined_call_operand.hbm [shape: f32[16,128], index: 3, kind: output, shape index: {}]
  %s4 = sld [smem:[#allocation0]]
  $region38: #{tpu_custom_call.1} parent=0
    _
  %s6 = ssub.s32 1, %s4
  %s7 = scalar_select 0, %s6, %s4
  $region1: #{tpu_custom_call.1} parent=0
    #allocation3 [shape = 'u8[8192]{0}', space=vmem, size = 0x2000, scoped, tag = 'input window, operand 0, single buffered']
    #allocation4 [shape = 's32[1]{0}', space=sflag, size = 0x4, scoped, tag = 'scoped memory for tpu_custom_call.1']
    #allocation5 [shape = 's32[1]{0}', space=sflag, size = 0x4, scoped, tag = 'scoped memory for tpu_custom_call.1']
    #allocation6 [shape = 'u8[131072]{0}', space=vmem, size = 0x20000, scoped, tag = 'input window, operand 1, single buffered']
    #allocation7 [shape = 's32[1]{0}', space=sflag, size = 0x4, scoped, tag = 'scoped memory for tpu_custom_call.1']
    #allocation8 [shape = 'u8[8192]{0}', space=vmem, size = 0x2000, scoped, tag = 'output window, operand 0, single buffered']
    %8 = vsyncpa [#allocation4], 0
    %9 = vsyncpa [#allocation7], 0
    %10 = vsyncpa [#allocation5], 0
    // Predicated region
    $region2: #{tpu_custom_call.1} parent=1 // pred_check
      _
    $region3: #{tpu_custom_call.1} parent=1 // pred_check_branch
      %12 = sbr.rel (0) target = $region5
    $region4: #{tpu_custom_call.1} parent=1 // pred_region
      %s14 = ssub.s32 256, 256
      %15 = vsyncadd [#allocation4], %s14
      %s16 = sshll.u32 [#allocation3], 4
      %s17 = int_to_ptr.vmem [resolvable:$true] %s16
      %22 = dma.hbm_to_vmem [thread:$0]  %s0, 256, %s17, [#allocation4], 128, 128, 8
    $region5: #{tpu_custom_call.1} parent=1 // pred_fallthru
      _
    // Predicated region
    $region6: #{tpu_custom_call.1} parent=1 // pred_check
      _
    $region7: #{tpu_custom_call.1} parent=1 // pred_check_branch
      %24 = sbr.rel (0) target = $region9
    $region8: #{tpu_custom_call.1} parent=1 // pred_region
      %s26 = ssub.s32 4096, 4096
      %27 = vsyncadd [#allocation7], %s26
      %s28 = sshll.u32 [#allocation6], 4
      %s29 = int_to_ptr.vmem [resolvable:$true] %s28
      %34 = dma.hbm_to_vmem [thread:$0]  %s1, 4096, %s29, [#allocation7], 256, 256, 16
    $region9: #{tpu_custom_call.1} parent=1 // pred_fallthru
      _
    // Predicated region
    $region10: #{tpu_custom_call.1} parent=1 // pred_check
      _
    $region11: #{tpu_custom_call.1} parent=1 // pred_check_branch
      %36 = sbr.rel (0) target = $region13
    $region12: #{tpu_custom_call.1} parent=1 // pred_region
      _
    $region13: #{tpu_custom_call.1} parent=1 // pred_fallthru
      _
    // Predicated region
    $region14: #{tpu_custom_call.1} parent=1 // pred_check
      _
    $region15: #{tpu_custom_call.1} parent=1 // pred_check_branch
      %38 = sbr.rel (0) target = $region17
    $region16: #{tpu_custom_call.1} parent=1 // pred_region
      %39 = dma.done [#allocation4], 256
    $region17: #{tpu_custom_call.1} parent=1 // pred_fallthru
      _
    // Predicated region
    $region18: #{tpu_custom_call.1} parent=1 // pred_check
      _
    $region19: #{tpu_custom_call.1} parent=1 // pred_check_branch
      %41 = sbr.rel (0) target = $region21
    $region20: #{tpu_custom_call.1} parent=1 // pred_region
      %42 = dma.done [#allocation7], 4096
    $region21: #{tpu_custom_call.1} parent=1 // pred_fallthru
      _
    %p43 = scmp.eq.s32.totalorder 0, 0
    // Predicated region
    $region22: #{tpu_custom_call.1} parent=1 // pred_check
      %p44 = pneg %p43
    $region23: #{tpu_custom_call.1} parent=1 // pred_check_branch
      %46 = sbr.rel (%p44) target = $region25
    $region24: #{tpu_custom_call.1} parent=1 // pred_region
      %47 = vst [vmem:[#allocation2] sm:$0xff] 0.0
      %48 = vst [vmem:[#allocation2 + $0x8] sm:$0xff] 0.0
      %49 = vst [vmem:[#allocation2 + $0x10] sm:$0xff] 0.0
      %50 = vst [vmem:[#allocation2 + $0x18] sm:$0xff] 0.0
    $region25: #{tpu_custom_call.1} parent=1 // pred_fallthru
      _
    %v51 = vld [vmem:[#allocation2] sm:$0xff]
    %v52 = vld [vmem:[#allocation2 + $0x8] sm:$0xff]
    %v53 = vld [vmem:[#allocation2 + $0x10] sm:$0xff]
    %v54 = vld [vmem:[#allocation2 + $0x18] sm:$0xff]
    %v55 = vld [vmem:[#allocation3] sm:$0xff]
    %v56 = vld [vmem:[#allocation3 + $0x8] sm:$0xff]
    %v57 = vld [vmem:[#allocation6] sm:$0xff]
    %v58 = vld [vmem:[#allocation6 + $0x8] sm:$0xff]
    %v59 = vld [vmem:[#allocation6 + $0x10] sm:$0xff]
    %v60 = vld [vmem:[#allocation6 + $0x18] sm:$0xff]
    %v61 = vld [vmem:[#allocation6 + $0x20] sm:$0xff]
    %v62 = vld [vmem:[#allocation6 + $0x28] sm:$0xff]
    %v63 = vld [vmem:[#allocation6 + $0x30] sm:$0xff]
    %v64 = vld [vmem:[#allocation6 + $0x38] sm:$0xff]
    %v65 = vld [vmem:[#allocation6 + $0x40] sm:$0xff]
    %v66 = vld [vmem:[#allocation6 + $0x48] sm:$0xff]
    %v67 = vld [vmem:[#allocation6 + $0x50] sm:$0xff]
    %v68 = vld [vmem:[#allocation6 + $0x58] sm:$0xff]
    %v69 = vld [vmem:[#allocation6 + $0x60] sm:$0xff]
    %v70 = vld [vmem:[#allocation6 + $0x68] sm:$0xff]
    %v71 = vld [vmem:[#allocation6 + $0x70] sm:$0xff]
    %v72 = vld [vmem:[#allocation6 + $0x78] sm:$0xff]
    %v73 = vld [vmem:[#allocation6 + $0x80] sm:$0xff]
    %v74 = vld [vmem:[#allocation6 + $0x88] sm:$0xff]
    %v75 = vld [vmem:[#allocation6 + $0x90] sm:$0xff]
    %v76 = vld [vmem:[#allocation6 + $0x98] sm:$0xff]
    %v77 = vld [vmem:[#allocation6 + $0xa0] sm:$0xff]
    %v78 = vld [vmem:[#allocation6 + $0xa8] sm:$0xff]
    %v79 = vld [vmem:[#allocation6 + $0xb0] sm:$0xff]
    %v80 = vld [vmem:[#allocation6 + $0xb8] sm:$0xff]
    %v81 = vld [vmem:[#allocation6 + $0xc0] sm:$0xff]
    %v82 = vld [vmem:[#allocation6 + $0xc8] sm:$0xff]
    %v83 = vld [vmem:[#allocation6 + $0xd0] sm:$0xff]
    %v84 = vld [vmem:[#allocation6 + $0xd8] sm:$0xff]
    %v85 = vld [vmem:[#allocation6 + $0xe0] sm:$0xff]
    %v86 = vld [vmem:[#allocation6 + $0xe8] sm:$0xff]
    %v87 = vld [vmem:[#allocation6 + $0xf0] sm:$0xff]
    %v88 = vld [vmem:[#allocation6 + $0xf8] sm:$0xff]
    %89 = vmatprep.subr.mxu0 %v58
    %90 = vmatpush1.msra.mxu0 %v57
    %91 = vmatprep.subr.mxu0 %v60
    %92 = vmatpush1.msra.mxu0 %v59
    %93 = vmatprep.subr.mxu0 %v62
    %94 = vmatpush1.msra.mxu0 %v61
    %95 = vmatprep.subr.mxu0 %v64
    %96 = vmatpush1.msra.mxu0 %v63
    %97 = vmatprep.subr.mxu0 %v66
    %98 = vmatpush1.msra.mxu0 %v65
    %99 = vmatprep.subr.mxu0 %v68
    %100 = vmatpush1.msra.mxu0 %v67
    %101 = vmatprep.subr.mxu0 %v70
    %102 = vmatpush1.msra.mxu0 %v69
    %103 = vmatprep.subr.mxu0 %v72
    %104 = vmatpush1.msra.mxu0 %v71
    %105 = vmatprep.subr.mxu0 %v74
    %106 = vmatpush1.msra.mxu0 %v73
    %107 = vmatprep.subr.mxu0 %v76
    %108 = vmatpush1.msra.mxu0 %v75
    %109 = vmatprep.subr.mxu0 %v78
    %110 = vmatpush1.msra.mxu0 %v77
    %111 = vmatprep.subr.mxu0 %v80
    %112 = vmatpush1.msra.mxu0 %v79
    %113 = vmatprep.subr.mxu0 %v82
    %114 = vmatpush1.msra.mxu0 %v81
    %115 = vmatprep.subr.mxu0 %v84
    %116 = vmatpush1.msra.mxu0 %v83
    %117 = vmatprep.subr.mxu0 %v86
    %118 = vmatpush1.msra.mxu0 %v85
    %119 = vmatprep.subr.mxu0 %v88
    %120 = vmatpush1.msra.mxu0 %v87
    %121 = vmatprep.subr.mxu0 0.0
    %122 = vmatpush1.msra.mxu0 0.0
    %123 = vmatprep.subr.mxu0 0.0
    %124 = vmatpush1.msra.mxu0 0.0
    %125 = vmatprep.subr.mxu0 0.0
    %126 = vmatpush1.msra.mxu0 0.0
    %127 = vmatprep.subr.mxu0 0.0
    %128 = vmatpush1.msra.mxu0 0.0
    %129 = vmatprep.subr.mxu0 0.0
    %130 = vmatpush1.msra.mxu0 0.0
    %131 = vmatprep.subr.mxu0 0.0
    %132 = vmatpush1.msra.mxu0 0.0
    %133 = vmatprep.subr.mxu0 0.0
    %134 = vmatpush1.msra.mxu0 0.0
    %135 = vmatprep.subr.mxu0 0.0
    %136 = vmatpush1.msra.mxu0 0.0
    %137 = vmatprep.subr.mxu0 0.0
    %138 = vmatpush1.msra.mxu0 0.0
    %139 = vmatprep.subr.mxu0 0.0
    %140 = vmatpush1.msra.mxu0 0.0
    %141 = vmatprep.subr.mxu0 0.0
    %142 = vmatpush1.msra.mxu0 0.0
    %143 = vmatprep.subr.mxu0 0.0
    %144 = vmatpush1.msra.mxu0 0.0
    %145 = vmatprep.subr.mxu0 0.0
    %146 = vmatpush1.msra.mxu0 0.0
    %147 = vmatprep.subr.mxu0 0.0
    %148 = vmatpush1.msra.mxu0 0.0
    %149 = vmatprep.subr.mxu0 0.0
    %150 = vmatpush1.msra.mxu0 0.0
    %151 = vmatprep.subr.mxu0 0.0
    %152 = vmatpush1.msra.mxu0 0.0
    %153 = vmatprep.mubr.f32.mxu0 0.0
    %154 = vmatmul.mubr.f32.gmra.mrb[0].mxu0 %v55
    %v155 = vpop.f32.mrb[0].mxu0
    %v156 = vadd.f32 0.0, %v155
    %v157 = vpop.f32.mrb[0].mxu0
    %v158 = vadd.f32 0.0, %v157
    %159 = vmatprep.mubr.f32.mxu0 0.0
    %160 = vmatmul.mubr.f32.gmra.mrb[0].mxu0 %v56
    %v161 = vpop.f32.mrb[0].mxu0
    %v162 = vadd.f32 0.0, %v161
    %v163 = vpop.f32.mrb[0].mxu0
    %v164 = vadd.f32 0.0, %v163
    %165 = vdwg.mxu0
    %v166 = vadd.f32 %v51, %v156
    %v167 = vadd.f32 %v52, %v158
    %v168 = vadd.f32 %v53, %v162
    %v169 = vadd.f32 %v54, %v164
    %170 = vst [vmem:[#allocation2] sm:$0xff] %v166
    %171 = vst [vmem:[#allocation2 + $0x8] sm:$0xff] %v167
    %172 = vst [vmem:[#allocation2 + $0x10] sm:$0xff] %v168
    %173 = vst [vmem:[#allocation2 + $0x18] sm:$0xff] %v169
    // Predicated region
    $region26: #{tpu_custom_call.1} parent=1 // pred_check
      %p174 = pneg %p43
    $region27: #{tpu_custom_call.1} parent=1 // pred_check_branch
      %176 = sbr.rel (%p174) target = $region29
    $region28: #{tpu_custom_call.1} parent=1 // pred_region
      %v177 = vld [vmem:[#allocation2] sm:$0xff]
      %v178 = vld [vmem:[#allocation2 + $0x8] sm:$0xff]
      %v179 = vld [vmem:[#allocation2 + $0x10] sm:$0xff]
      %v180 = vld [vmem:[#allocation2 + $0x18] sm:$0xff]
      %v181 = vld [vmem:[%s2] sm:$0x3]
      %v183 = vlaneseq
      %v184 = vshrl.u32 %v183, 7
      %v185 = vsub.s32 0, %v184
      %v186 = vrot.slane %v181, %v185
      %v187 = vlaneseq
      %v188 = vshrl.u32 %v187, 7
      %v189 = vsub.s32 1, %v188
      %v190 = vrot.slane %v181, %v189
      %v193 = vadd.f32 %v177, %v186
      %v194 = vadd.f32 %v178, %v190
      %v195 = vadd.f32 %v179, %v186
      %v196 = vadd.f32 %v180, %v190
      %v197 = vmax.f32 %v193, 0.0
      %v198 = vmax.f32 %v195, 0.0
      %v199 = vmul.f32 %v197, %v194
      %v200 = vmul.f32 %v198, %v196
      %201 = vst [vmem:[#allocation8] sm:$0xff] %v199
      %202 = vst [vmem:[#allocation8 + $0x8] sm:$0xff] %v200
    $region29: #{tpu_custom_call.1} parent=1 // pred_fallthru
      _
    // Predicated region
    $region30: #{tpu_custom_call.1} parent=1 // pred_check
      _
    $region31: #{tpu_custom_call.1} parent=1 // pred_check_branch
      %204 = sbr.rel (0) target = $region33
    $region32: #{tpu_custom_call.1} parent=1 // pred_region
      %s206 = ssub.s32 256, 256
      %207 = vsyncadd [#allocation5], %s206
      %s208 = sshll.u32 [#allocation8], 4
      %s209 = int_to_ptr.vmem [resolvable:$true] %s208
      %214 = dma.vmem_to_hbm [thread:$0]  %s209, 256, %s3, [#allocation5], 128, 128, 8
    $region33: #{tpu_custom_call.1} parent=1 // pred_fallthru
      _
    // Predicated region
    $region34: #{tpu_custom_call.1} parent=1 // pred_check
      _
    $region35: #{tpu_custom_call.1} parent=1 // pred_check_branch
      %216 = sbr.rel (0) target = $region37
    $region36: #{tpu_custom_call.1} parent=1 // pred_region
      %217 = dma.done [#allocation5], 256
    $region37: #{tpu_custom_call.1} parent=1 // pred_fallthru
      _
    %218 = vsyncpa [#allocation4], 1
    %219 = vsyncpa [#allocation7], 1
    %220 = vsyncpa [#allocation5], 1

</llo_original>
